<compile_context>
chip_gen: v5e
topology: v5e:2x2
jax: 0.10.0
libtpu: 0.0.40
codegen_flags: <defaults>
</compile_context>

<pallas_src>
import math
import numpy as np

import jax
import jax.numpy as jnp
from jax import lax
from jax.experimental import pallas as pl
from jax.experimental.pallas import tpu as pltpu


# ---------------------------------------------------------------------------
# Host-side construction of the per-axis linear operators (static shapes only).
# ---------------------------------------------------------------------------

def _reflect_indices(n: int, p: int) -> np.ndarray:
    """PyTorch 'reflect' padding indices (edge not repeated); requires p < n."""
    left = np.arange(p, 0, -1)
    mid = np.arange(n)
    right = np.arange(n - 2, n - 2 - p, -1)
    return np.concatenate([left, mid, right])


def _gather_matrix(idx: np.ndarray, n_src: int) -> np.ndarray:
    """One-hot gather matrix; out-of-range indices become zero rows (zero pad)."""
    m = np.zeros((len(idx), n_src), dtype=np.float32)
    rows = np.arange(len(idx))
    valid = (idx >= 0) & (idx < n_src)
    m[rows[valid], idx[valid]] = 1.0
    return m


def _bilinear_matrix(n_in: int, n_out: int) -> np.ndarray:
    """Bilinear (align_corners=False, half-pixel centers) resize matrix."""
    if n_in == n_out:
        return np.eye(n_in, dtype=np.float32)
    m = np.zeros((n_out, n_in), dtype=np.float32)
    scale = n_in / n_out
    for o in range(n_out):
        src = (o + 0.5) * scale - 0.5
        i0 = int(np.floor(src))
        w1 = src - i0
        lo = min(max(i0, 0), n_in - 1)
        hi = min(max(i0 + 1, 0), n_in - 1)
        m[o, lo] += 1.0 - w1
        m[o, hi] += w1
    return m


def _build_matrices(H: int, W: int, T: int):
    """Return (A_h (Hout,H), A_w^T (W,Wout)) implementing CropOrPadTo for this shape."""
    if W < T:  # pad branch (reflect pad on all four sides)
        p = (T - W) // 2
        idx_h = _reflect_indices(H, p)
        idx_w = _reflect_indices(W, p)
    else:      # crop branch (CenterCrop(T))
        top = int(round((H - T) / 2.0))
        left = int(round((W - T) / 2.0))
        idx_h = np.arange(top, top + T)
        idx_w = np.arange(left, left + T)

    H2, W2 = len(idx_h), len(idx_w)
    # Resize(T): smaller edge -> T, preserve aspect ratio (torchvision semantics).
    if W2 <= H2:
        new_w, new_h = T, int(T * H2 / W2)
    else:
        new_h, new_w = T, int(T * W2 / H2)

    A_h = _bilinear_matrix(H2, new_h) @ _gather_matrix(idx_h, H)  # (new_h, H)
    A_w = _bilinear_matrix(W2, new_w) @ _gather_matrix(idx_w, W)  # (new_w, W)
    return A_h.astype(np.float32), np.ascontiguousarray(A_w.T, dtype=np.float32)


# ---------------------------------------------------------------------------
# Tiling choice: TB images per grid step, interleaved along the lane (W) axis.
# ---------------------------------------------------------------------------

def _cdiv(a: int, b: int) -> int:
    return -(-a // b)


def _round_up(x: int, m: int) -> int:
    return _cdiv(x, m) * m


def _choose_tb(BC, H, W, Hout, Wout, in_itemsize, c_itemsize):
    """Images per grid step: lane-dense output (TB*Wout % 128 == 0 when possible),
    ~0.5-1 MiB per input DMA, conservative VMEM budget, grid >= 2 when possible."""
    # Smallest TB making the output slab last dim a multiple of 128 (unmasked vst).
    tb_lane = 128 // math.gcd(Wout, 128)
    # Don't pad a tiny batch far past BC just to reach 128 lanes.
    base = max(1, min(tb_lane, _round_up(BC, 8)))

    def vmem_bytes(t):
        slab_in = t * H * W * in_itemsize
        slab_out = t * Hout * Wout * in_itemsize
        ops = (Hout * H + (t * W) * (t * Wout)) * c_itemsize   # A_h + block-diag A_w^T
        temps = (Hout * t * W + Hout * t * Wout) * 4            # f32 matmul results
        return 2 * (slab_in + slab_out) + 2 * ops + temps       # double-buffered I/O

    budget = 12 << 20   # safe under 16/32/32 MiB scoped VMEM defaults (v5e/v6e/v7x)
    target = 1 << 20    # ~1 MiB input slab per grid step

    tb = base
    while tb > 1 and vmem_bytes(tb) > budget:   # huge images: give up lane density
        tb -= 1
    if tb < base:
        return tb

    padded = _round_up(BC, base)
    best = tb
    t = tb
    while True:
        t += base
        if t > padded:
            break
        if t * H * W * in_itemsize > target:
            break
        if vmem_bytes(t) > budget:
            break
        if _cdiv(padded, t) * t != padded:                 # would add extra zero-pad work
            continue
        if _cdiv(padded, t) < 2 and _cdiv(padded, best) >= 2:
            continue                                       # keep >=2 steps for v7x megacore
        best = t
    return best


# ---------------------------------------------------------------------------
# Pallas kernel: one (H, TB*W) slab per grid step.
#   tmp = A_h @ slab            (Hout, TB*W)
#   out = tmp @ blockdiag(A_w^T) (Hout, TB*Wout)   -- lane-dense store
# ---------------------------------------------------------------------------

def _make_kernel(compute_dtype, precision):
    def kernel(ah_ref, awt_ref, x_ref, o_ref):
        x = x_ref[0]
        if x.dtype != compute_dtype:
            x = x.astype(compute_dtype)
        tmp = jnp.dot(ah_ref[...], x,
                      preferred_element_type=jnp.float32, precision=precision)
        if compute_dtype != jnp.float32:
            tmp = tmp.astype(compute_dtype)     # native bf16 MXU path for 2nd dot
        out = jnp.dot(tmp, awt_ref[...],
                      preferred_element_type=jnp.float32, precision=precision)
        o_ref[0] = out.astype(o_ref.dtype)
    return kernel


def crop_or_pad_to(img: jax.Array, height: int, *, precision=None) -> jax.Array:
    """Pallas equivalent of CropOrPadTo(height).forward(img) for NCHW input."""
    B, C, H, W = img.shape
    A_h, A_wt = _build_matrices(H, W, height)
    Hout, Wout = A_h.shape[0], A_wt.shape[1]
    BC = B * C

    # bf16 inputs: keep bf16 operands (MXU-native, f32 accumulate). Other dtypes: f32.
    compute_dtype = jnp.bfloat16 if img.dtype == jnp.bfloat16 else jnp.float32
    if precision is None:
        # Mosaic matmul lowering supports DEFAULT / HIGHEST only (no 3-pass HIGH):
        # keep HIGHEST for f32 so the crop path stays bit-accurate (HBM-bound anyway
        # after batching); callers (esp. v5e) may pass Precision.DEFAULT explicitly.
        precision = (lax.Precision.DEFAULT if compute_dtype == jnp.bfloat16
                     else lax.Precision.HIGHEST)

    in_itemsize = jnp.dtype(img.dtype).itemsize
    c_itemsize = jnp.dtype(compute_dtype).itemsize

    TB = _choose_tb(BC, H, W, Hout, Wout, in_itemsize, c_itemsize)
    G = _cdiv(BC, TB)
    pad = G * TB - BC

    # Interleave TB images along the lane (W) axis -> lane-dense slabs (layout
    # plumbing in the wrapper, not kernel compute).
    x3 = img.reshape(BC, H, W)
    if pad:
        x3 = jnp.concatenate([x3, jnp.zeros((pad, H, W), img.dtype)], axis=0)
    x_slab = x3.reshape(G, TB, H, W).transpose(0, 2, 1, 3).reshape(G, H, TB * W)

    ah = jnp.asarray(A_h, dtype=compute_dtype)                         # (Hout, H)
    awt_bd = jnp.asarray(np.kron(np.eye(TB, dtype=np.float32), A_wt),
                         dtype=compute_dtype)                          # (TB*W, TB*Wout)

    Wl, Wo = TB * W, TB * Wout
    flops = 2 * G * (Hout * H * Wl + Hout * Wl * Wo)
    bytes_accessed = ((x_slab.size + G * Hout * Wo) * in_itemsize
                      + (ah.size + awt_bd.size) * c_itemsize)

    out_slab = pl.pallas_call(
        _make_kernel(compute_dtype, precision),
        out_shape=jax.ShapeDtypeStruct((G, Hout, Wo), img.dtype),
        grid_spec=pl.GridSpec(
            grid=(G,),
            in_specs=[
                # Operator matrices: constant block index -> stay VMEM-resident.
                pl.BlockSpec((Hout, H), lambda i: (0, 0)),
                pl.BlockSpec((Wl, Wo), lambda i: (0, 0)),
                # One lane-dense slab per step; full spatial extent per block.
                pl.BlockSpec((1, H, Wl), lambda i: (i, 0, 0)),
            ],
            out_specs=pl.BlockSpec((1, Hout, Wo), lambda i: (i, 0, 0)),
        ),
        compiler_params=pltpu.CompilerParams(
            # No cross-step carry -> parallel; lets v7x shard slabs across both TCs.
            dimension_semantics=("parallel",),
        ),
        cost_estimate=pl.CostEstimate(
            flops=flops, transcendentals=0, bytes_accessed=bytes_accessed),
    )(ah, awt_bd, x_slab)

    out = (out_slab.reshape(G, Hout, TB, Wout)
           .transpose(0, 2, 1, 3)
           .reshape(G * TB, Hout, Wout)[:BC]
           .reshape(B, C, Hout, Wout))
    return out


# ---------------------------------------------------------------------------
# Pure-JAX/numpy reference (same linear map, computed in float64).
# ---------------------------------------------------------------------------

def crop_or_pad_to_ref(img: jax.Array, height: int) -> jax.Array:
    B, C, H, W = img.shape
    A_h, A_wt = _build_matrices(H, W, height)
    x = np.asarray(img, dtype=np.float64)
    y = np.einsum('oh,bchw,wv->bcov',
                  A_h.astype(np.float64), x, A_wt.astype(np.float64))
    return jnp.asarray(y, dtype=img.dtype)


if __name__ == "__main__":
    key = jax.random.PRNGKey(0)
    k1, k2, k3 = jax.random.split(key, 3)
    T = 16

    # Crop branch: W >= T -> CenterCrop(16); Resize(16) is then a no-op.
    x_crop = jax.random.uniform(k1, (2, 4, 24, 24), dtype=jnp.float32)
    y_crop = crop_or_pad_to(x_crop, T)
    jax.block_until_ready(y_crop)
    assert y_crop.shape == (2, 4, 16, 16) and y_crop.dtype == x_crop.dtype
    ref_crop = crop_or_pad_to_ref(x_crop, T)
    assert bool(jnp.allclose(y_crop, ref_crop, atol=1e-3, rtol=1e-3))
    # Crop branch must reproduce the centered 16x16 window (resize = identity).
    assert bool(jnp.allclose(y_crop, x_crop[:, :, 4:20, 4:20], atol=1e-3))

    # Same input through the cheap single-pass MXU path (v5e recommendation).
    y_fast = crop_or_pad_to(x_crop, T, precision=lax.Precision.DEFAULT)
    jax.block_until_ready(y_fast)
    assert bool(jnp.allclose(y_fast, ref_crop, atol=3e-2, rtol=3e-2))

    # Pad branch: W < T -> reflect pad by 3, then a real bilinear Resize(16)
    # ((12, 9) -> pad -> (18, 15) -> resize -> (19, 16)).
    x_pad = jax.random.uniform(k2, (2, 4, 12, 9), dtype=jnp.float32)
    y_pad = crop_or_pad_to(x_pad, T)
    jax.block_until_ready(y_pad)
    ref_pad = crop_or_pad_to_ref(x_pad, T)
    assert y_pad.shape == ref_pad.shape == (2, 4, 19, 16)
    assert bool(jnp.allclose(y_pad, ref_pad, atol=1e-3, rtol=1e-3))

    # bf16 path: native bf16 operands on the MXU, no f32 up-cast of the image.
    x_bf16 = jax.random.uniform(k3, (2, 4, 24, 24), dtype=jnp.float32).astype(jnp.bfloat16)
    y_bf16 = crop_or_pad_to(x_bf16, T)
    jax.block_until_ready(y_bf16)
    assert y_bf16.shape == (2, 4, 16, 16) and y_bf16.dtype == jnp.bfloat16
    assert bool(jnp.allclose(y_bf16.astype(jnp.float32),
                             x_bf16[:, :, 4:20, 4:20].astype(jnp.float32),
                             atol=5e-2))

    print("KERNEL_OK")
</pallas_src>

<mosaic_0001>
module attributes {stable_mosaic.version = 11 : i64} {
  func.func @kernel(%arg0: i32, %arg1: memref<16x24xf32, #tpu.memory_space<vmem>>, %arg2: memref<192x128xf32, #tpu.memory_space<vmem>>, %arg3: memref<1x24x192xf32, #tpu.memory_space<vmem>>, %arg4: memref<1x16x128xf32, #tpu.memory_space<vmem>>) attributes {dimension_semantics = [#tpu.dimension_semantics<parallel>], iteration_bounds = array<i64: 1>, scalar_prefetch = 0 : i64, scratch_operands = 0 : i64, tpu.core_type = #tpu.core_type<tc>, window_params = [{pipeline_mode = #tpu.pipeline_mode<synchronous>, transform_indices = @transform_0, window_bounds = array<i64: 16, 24>}, {pipeline_mode = #tpu.pipeline_mode<synchronous>, transform_indices = @transform_1, window_bounds = array<i64: 192, 128>}, {transform_indices = @transform_2, window_bounds = array<i64: 1, 24, 192>}, {transform_indices = @transform_3, window_bounds = array<i64: 1, 16, 128>}]} {
    %c0 = arith.constant 0 : index
    %c0_0 = arith.constant 0 : index
    %c0_1 = arith.constant 0 : index
    %0 = vector.load %arg3[%c0, %c0_0, %c0_1] : memref<1x24x192xf32, #tpu.memory_space<vmem>>, vector<1x24x192xf32>
    %1 = vector.shape_cast %0 : vector<1x24x192xf32> to vector<24x192xf32>
    %c0_2 = arith.constant 0 : index
    %c0_3 = arith.constant 0 : index
    %2 = vector.load %arg1[%c0_2, %c0_3] : memref<16x24xf32, #tpu.memory_space<vmem>>, vector<16x24xf32>
    %cst = arith.constant dense<0.000000e+00> : vector<16x192xf32>
    %3 = tpu.matmul %2, %1, %cst {dimension_numbers = #tpu.dot_dimension_numbers<[1], [0], [0], [1], [0, 0, 1, 1], [], []>, precision = #tpu.contract_precision<fp32>} : vector<16x24xf32>, vector<24x192xf32>, vector<16x192xf32> -> vector<16x192xf32>
    %c0_4 = arith.constant 0 : index
    %c0_5 = arith.constant 0 : index
    %4 = vector.load %arg2[%c0_4, %c0_5] : memref<192x128xf32, #tpu.memory_space<vmem>>, vector<192x128xf32>
    %cst_6 = arith.constant dense<0.000000e+00> : vector<16x128xf32>
    %5 = tpu.matmul %3, %4, %cst_6 {dimension_numbers = #tpu.dot_dimension_numbers<[1], [0], [0], [1], [0, 0, 1, 1], [], []>, precision = #tpu.contract_precision<fp32>} : vector<16x192xf32>, vector<192x128xf32>, vector<16x128xf32> -> vector<16x128xf32>
    %c0_7 = arith.constant 0 : index
    %c0_8 = arith.constant 0 : index
    %c0_9 = arith.constant 0 : index
    %6 = vector.load %arg4[%c0_7, %c0_8, %c0_9] : memref<1x16x128xf32, #tpu.memory_space<vmem>>, vector<1x16x128xf32>
    %7 = vector.shape_cast %6 : vector<1x16x128xf32> to vector<16x128xf32>
    %8 = vector.shape_cast %5 : vector<16x128xf32> to vector<1x16x128xf32>
    tpu.vector_store %arg4[%c0_7, %c0_8, %c0_9], %8 {strides = array<i32>} : memref<1x16x128xf32, #tpu.memory_space<vmem>>, vector<1x16x128xf32>,
    return
  }
  func.func @transform_0(%arg0: i32) -> (i32, i32) {
    %c0_i32 = arith.constant 0 : i32
    %c0_i32_0 = arith.constant 0 : i32
    %c0_i32_1 = arith.constant 0 : i32
    return %c0_i32, %c0_i32_0 : i32, i32
  }
  func.func @transform_1(%arg0: i32) -> (i32, i32) {
    %c0_i32 = arith.constant 0 : i32
    %c0_i32_0 = arith.constant 0 : i32
    %c0_i32_1 = arith.constant 0 : i32
    return %c0_i32, %c0_i32_0 : i32, i32
  }
  func.func @transform_2(%arg0: i32) -> (i32, i32, i32) {
    %c0_i32 = arith.constant 0 : i32
    %c0_i32_0 = arith.constant 0 : i32
    %c0_i32_1 = arith.constant 0 : i32
    return %arg0, %c0_i32, %c0_i32_0 : i32, i32, i32
  }
  func.func @transform_3(%arg0: i32) -> (i32, i32, i32) {
    %c0_i32 = arith.constant 0 : i32
    %c0_i32_0 = arith.constant 0 : i32
    %c0_i32_1 = arith.constant 0 : i32
    return %arg0, %c0_i32, %c0_i32_0 : i32, i32, i32
  }
}

</mosaic_0001>

<llo_original>
// kernel: tpu_custom_call.1
$region0: #{tpu_custom_call.1}
  #allocation0 [shape = 'u32[]', space=smem, size = 0x4, offset = 0x4, fixed_abs, tag = 'smem constant byte address 0x4 - core index']
  #allocation1 [shape = 'u32[72,128]{1,0:T(1,128)}', space=vmem, size = 0x9000, scoped, tag = 'internal scratch']
  %s0 = inlined_call_operand.hbm [shape: f32[16,24], index: 0, kind: input, shape index: {}]
  %s1 = inlined_call_operand.hbm [shape: f32[192,128], index: 1, kind: input, shape index: {}]
  %s2 = inlined_call_operand.hbm [shape: f32[1,24,192], index: 2, kind: input, shape index: {}]
  %s3 = inlined_call_operand.hbm [shape: f32[1,16,128], index: 3, kind: output, shape index: {}]
  %s4 = sld [smem:[#allocation0]]
  $region34: #{tpu_custom_call.1} parent=0
    _
  %s6 = ssub.s32 1, %s4
  %s7 = scalar_select 0, %s6, %s4
  $region1: #{tpu_custom_call.1} parent=0
    #allocation2 [shape = 'u8[8192]{0}', space=vmem, size = 0x2000, scoped, tag = 'input window, operand 0, single buffered']
    #allocation3 [shape = 's32[1]{0}', space=sflag, size = 0x4, scoped, tag = 'scoped memory for tpu_custom_call.1']
    #allocation4 [shape = 's32[1]{0}', space=sflag, size = 0x4, scoped, tag = 'scoped memory for tpu_custom_call.1']
    #allocation5 [shape = 'u8[98304]{0}', space=vmem, size = 0x18000, scoped, tag = 'input window, operand 1, single buffered']
    #allocation6 [shape = 's32[1]{0}', space=sflag, size = 0x4, scoped, tag = 'scoped memory for tpu_custom_call.1']
    #allocation7 [shape = 'u8[24576]{0}', space=vmem, size = 0x6000, scoped, tag = 'input window, operand 2, single buffered']
    #allocation8 [shape = 'u8[8192]{0}', space=vmem, size = 0x2000, scoped, tag = 'output window, operand 0, single buffered']
    %8 = vsyncpa [#allocation3], 0
    %9 = vsyncpa [#allocation6], 0
    %10 = vsyncpa [#allocation4], 0
    // Predicated region
    $region2: #{tpu_custom_call.1} parent=1 // pred_check
      _
    $region3: #{tpu_custom_call.1} parent=1 // pred_check_branch
      %12 = sbr.rel (0) target = $region5
    $region4: #{tpu_custom_call.1} parent=1 // pred_region
      %14 = vsyncadd [#allocation3], 0
      %s15 = sshll.u32 %s0, 4
      %s16 = int_to_ptr.hbm [resolvable:$true] %s15
      %s17 = sshll.u32 [#allocation2], 4
      %s18 = int_to_ptr.vmem [resolvable:$true] %s17
      %23 = dma.hbm_to_vmem [thread:$0]  %s16, 256, %s18, [#allocation3], 128, 128, 8
    $region5: #{tpu_custom_call.1} parent=1 // pred_fallthru
      _
    // Predicated region
    $region6: #{tpu_custom_call.1} parent=1 // pred_check
      _
    $region7: #{tpu_custom_call.1} parent=1 // pred_check_branch
      %25 = sbr.rel (0) target = $region9
    $region8: #{tpu_custom_call.1} parent=1 // pred_region
      %27 = vsyncadd [#allocation6], 0
      %s28 = sshll.u32 %s1, 4
      %s29 = int_to_ptr.hbm [resolvable:$true] %s28
      %s30 = sshll.u32 [#allocation5], 4
      %s31 = int_to_ptr.vmem [resolvable:$true] %s30
      %36 = dma.hbm_to_vmem [thread:$0]  %s29, 3072, %s31, [#allocation6], 128, 128, 8
    $region9: #{tpu_custom_call.1} parent=1 // pred_fallthru
      _
    // Predicated region
    $region10: #{tpu_custom_call.1} parent=1 // pred_check
      _
    $region11: #{tpu_custom_call.1} parent=1 // pred_check_branch
      %38 = sbr.rel (0) target = $region13
    $region12: #{tpu_custom_call.1} parent=1 // pred_region
      %40 = vsyncadd [#allocation6], 0
      %s41 = sshll.u32 %s2, 4
      %s42 = int_to_ptr.hbm [resolvable:$true] %s41
      %s43 = sshll.u32 [#allocation7], 4
      %s44 = int_to_ptr.vmem [resolvable:$true] %s43
      %49 = dma.hbm_to_vmem [thread:$0]  %s42, 768, %s44, [#allocation6], 256, 256, 16
    $region13: #{tpu_custom_call.1} parent=1 // pred_fallthru
      _
    // Predicated region
    $region14: #{tpu_custom_call.1} parent=1 // pred_check
      _
    $region15: #{tpu_custom_call.1} parent=1 // pred_check_branch
      %51 = sbr.rel (0) target = $region17
    $region16: #{tpu_custom_call.1} parent=1 // pred_region
      %53 = dma.done [#allocation3], 256
    $region17: #{tpu_custom_call.1} parent=1 // pred_fallthru
      _
    // Predicated region
    $region18: #{tpu_custom_call.1} parent=1 // pred_check
      _
    $region19: #{tpu_custom_call.1} parent=1 // pred_check_branch
      %55 = sbr.rel (0) target = $region21
    $region20: #{tpu_custom_call.1} parent=1 // pred_region
      %57 = dma.done [#allocation6], 3072
    $region21: #{tpu_custom_call.1} parent=1 // pred_fallthru
      _
    // Predicated region
    $region22: #{tpu_custom_call.1} parent=1 // pred_check
      _
    $region23: #{tpu_custom_call.1} parent=1 // pred_check_branch
      %59 = sbr.rel (0) target = $region25
    $region24: #{tpu_custom_call.1} parent=1 // pred_region
      %61 = dma.done [#allocation6], 768
    $region25: #{tpu_custom_call.1} parent=1 // pred_fallthru
      _
    %v62 = vld [vmem:[#allocation7] sm:$0xff]
    %v63 = vld [vmem:[#allocation7 + $0x8] sm:$0xff]
    %v64 = vld [vmem:[#allocation7 + $0x10] sm:$0xff]
    %v65 = vld [vmem:[#allocation7 + $0x18] sm:$0xff]
    %v66 = vld [vmem:[#allocation7 + $0x20] sm:$0xff]
    %v67 = vld [vmem:[#allocation7 + $0x28] sm:$0xff]
    %v68 = vld [vmem:[#allocation2] sm:$0xff]
    %v69 = vld [vmem:[#allocation2 + $0x8] sm:$0xff]
    %vm70 = vcmask 195584
    %v72 = vsel %vm70, %v68, 0
    %v75 = vsel %vm70, %v69, 0
    %77 = vmatpush.msra.mxu0 0.0
    %78 = vmatpush.msra.mxu0 0.0
    %79 = vmatpush.msra.mxu0 0.0
    %80 = vmatpush.msra.mxu0 0.0
    %81 = vmatpush.msra.mxu0 0.0
    %82 = vmatpush.msra.mxu0 0.0
    %83 = vmatpush.msra.mxu0 0.0
    %84 = vmatpush.msra.mxu0 0.0
    %85 = vmatpush.msra.mxu0 0.0
    %86 = vmatpush.msra.mxu0 0.0
    %87 = vmatpush.msra.mxu0 0.0
    %88 = vmatpush.msra.mxu0 0.0
    %89 = vmatpush.msra.mxu0 0.0
    %v90 = vand.u32 %v66, 4294901760
    %91 = vmatpush.msra.mxu0 %v90
    %v92 = vand.u32 %v64, 4294901760
    %93 = vmatpush.msra.mxu0 %v92
    %v94 = vand.u32 %v62, 4294901760
    %95 = vmatpush.msra.mxu0 %v94
    %v96 = vand.u32 %v72, 4294901760
    %v97 = vsub.f32 %v72, %v96
    %v98 = vand.u32 %v97, 4294901760
    %v99 = vsub.f32 %v97, %v98
    %v100 = vand.u32 %v99, 4294901760
    %101 = vmatmul.f32.gmra.mxu0 %v100
    %v102 = vpop.f32.mrf.mxu0
    %v103 = vadd.f32 0.0, %v102
    %v104 = vand.u32 %v75, 4294901760
    %v105 = vsub.f32 %v75, %v104
    %v106 = vand.u32 %v105, 4294901760
    %v107 = vsub.f32 %v105, %v106
    %v108 = vand.u32 %v107, 4294901760
    %109 = vmatmul.f32.gmra.mxu0 %v108
    %v110 = vpop.f32.mrf.mxu0
    %v111 = vadd.f32 0.0, %v110
    %112 = vdwg.mxu0
    %113 = vmatpush.msra.mxu0 0.0
    %114 = vmatpush.msra.mxu0 0.0
    %115 = vmatpush.msra.mxu0 0.0
    %116 = vmatpush.msra.mxu0 0.0
    %117 = vmatpush.msra.mxu0 0.0
    %118 = vmatpush.msra.mxu0 0.0
    %119 = vmatpush.msra.mxu0 0.0
    %120 = vmatpush.msra.mxu0 0.0
    %121 = vmatpush.msra.mxu0 0.0
    %122 = vmatpush.msra.mxu0 0.0
    %123 = vmatpush.msra.mxu0 0.0
    %124 = vmatpush.msra.mxu0 0.0
    %125 = vmatpush.msra.mxu0 0.0
    %v126 = vand.u32 %v66, 4294901760
    %v127 = vsub.f32 %v66, %v126
    %v128 = vand.u32 %v127, 4294901760
    %v129 = vsub.f32 %v127, %v128
    %v130 = vand.u32 %v129, 4294901760
    %131 = vmatpush.msra.mxu0 %v130
    %v132 = vand.u32 %v64, 4294901760
    %v133 = vsub.f32 %v64, %v132
    %v134 = vand.u32 %v133, 4294901760
    %v135 = vsub.f32 %v133, %v134
    %v136 = vand.u32 %v135, 4294901760
    %137 = vmatpush.msra.mxu0 %v136
    %v138 = vand.u32 %v62, 4294901760
    %v139 = vsub.f32 %v62, %v138
    %v140 = vand.u32 %v139, 4294901760
    %v141 = vsub.f32 %v139, %v140
    %v142 = vand.u32 %v141, 4294901760
    %143 = vmatpush.msra.mxu0 %v142
    %v144 = vand.u32 %v72, 4294901760
    %145 = vmatmul.f32.gmra.mxu0 %v144
    %v146 = vpop.f32.mrf.mxu0
    %v147 = vadd.f32 %v103, %v146
    %v148 = vand.u32 %v75, 4294901760
    %149 = vmatmul.f32.gmra.mxu0 %v148
    %v150 = vpop.f32.mrf.mxu0
    %v151 = vadd.f32 %v111, %v150
    %152 = vdwg.mxu0
    %153 = vmatpush.msra.mxu0 0.0
    %154 = vmatpush.msra.mxu0 0.0
    %155 = vmatpush.msra.mxu0 0.0
    %156 = vmatpush.msra.mxu0 0.0
    %157 = vmatpush.msra.mxu0 0.0
    %158 = vmatpush.msra.mxu0 0.0
    %159 = vmatpush.msra.mxu0 0.0
    %160 = vmatpush.msra.mxu0 0.0
    %161 = vmatpush.msra.mxu0 0.0
    %162 = vmatpush.msra.mxu0 0.0
    %163 = vmatpush.msra.mxu0 0.0
    %164 = vmatpush.msra.mxu0 0.0
    %165 = vmatpush.msra.mxu0 0.0
    %v166 = vand.u32 %v66, 4294901760
    %v167 = vsub.f32 %v66, %v166
    %168 = vmatpush.msra.mxu0 %v167
    %v169 = vand.u32 %v64, 4294901760
    %v170 = vsub.f32 %v64, %v169
    %171 = vmatpush.msra.mxu0 %v170
    %v172 = vand.u32 %v62, 4294901760
    %v173 = vsub.f32 %v62, %v172
    %174 = vmatpush.msra.mxu0 %v173
    %v175 = vand.u32 %v72, 4294901760
    %v176 = vsub.f32 %v72, %v175
    %177 = vmatmul.f32.gmra.mxu0 %v176
    %v178 = vpop.f32.mrf.mxu0
    %v179 = vadd.f32 %v147, %v178
    %v180 = vand.u32 %v75, 4294901760
    %v181 = vsub.f32 %v75, %v180
    %182 = vmatmul.f32.gmra.mxu0 %v181
    %v183 = vpop.f32.mrf.mxu0
    %v184 = vadd.f32 %v151, %v183
    %185 = vdwg.mxu0
    %186 = vmatpush.msra.mxu0 0.0
    %187 = vmatpush.msra.mxu0 0.0
    %188 = vmatpush.msra.mxu0 0.0
    %189 = vmatpush.msra.mxu0 0.0
    %190 = vmatpush.msra.mxu0 0.0
    %191 = vmatpush.msra.mxu0 0.0
    %192 = vmatpush.msra.mxu0 0.0
    %193 = vmatpush.msra.mxu0 0.0
    %194 = vmatpush.msra.mxu0 0.0
    %195 = vmatpush.msra.mxu0 0.0
    %196 = vmatpush.msra.mxu0 0.0
    %197 = vmatpush.msra.mxu0 0.0
    %198 = vmatpush.msra.mxu0 0.0
    %v199 = vand.u32 %v66, 4294901760
    %200 = vmatpush.msra.mxu0 %v199
    %v201 = vand.u32 %v64, 4294901760
    %202 = vmatpush.msra.mxu0 %v201
    %v203 = vand.u32 %v62, 4294901760
    %204 = vmatpush.msra.mxu0 %v203
    %v205 = vand.u32 %v72, 4294901760
    %v206 = vsub.f32 %v72, %v205
    %v207 = vand.u32 %v206, 4294901760
    %208 = vmatmul.f32.gmra.mxu0 %v207
    %v209 = vpop.f32.mrf.mxu0
    %v210 = vadd.f32 %v179, %v209
    %v211 = vand.u32 %v75, 4294901760
    %v212 = vsub.f32 %v75, %v211
    %v213 = vand.u32 %v212, 4294901760
    %214 = vmatmul.f32.gmra.mxu0 %v213
    %v215 = vpop.f32.mrf.mxu0
    %v216 = vadd.f32 %v184, %v215
    %217 = vdwg.mxu0
    %218 = vmatpush.msra.mxu0 0.0
    %219 = vmatpush.msra.mxu0 0.0
    %220 = vmatpush.msra.mxu0 0.0
    %221 = vmatpush.msra.mxu0 0.0
    %222 = vmatpush.msra.mxu0 0.0
    %223 = vmatpush.msra.mxu0 0.0
    %224 = vmatpush.msra.mxu0 0.0
    %225 = vmatpush.msra.mxu0 0.0
    %226 = vmatpush.msra.mxu0 0.0
    %227 = vmatpush.msra.mxu0 0.0
    %228 = vmatpush.msra.mxu0 0.0
    %229 = vmatpush.msra.mxu0 0.0
    %230 = vmatpush.msra.mxu0 0.0
    %v231 = vand.u32 %v66, 4294901760
    %v232 = vsub.f32 %v66, %v231
    %v233 = vand.u32 %v232, 4294901760
    %234 = vmatpush.msra.mxu0 %v233
    %v235 = vand.u32 %v64, 4294901760
    %v236 = vsub.f32 %v64, %v235
    %v237 = vand.u32 %v236, 4294901760
    %238 = vmatpush.msra.mxu0 %v237
    %v239 = vand.u32 %v62, 4294901760
    %v240 = vsub.f32 %v62, %v239
    %v241 = vand.u32 %v240, 4294901760
    %242 = vmatpush.msra.mxu0 %v241
    %v243 = vand.u32 %v72, 4294901760
    %244 = vmatmul.f32.gmra.mxu0 %v243
    %v245 = vpop.f32.mrf.mxu0
    %v246 = vadd.f32 %v210, %v245
    %v247 = vand.u32 %v75, 4294901760
    %248 = vmatmul.f32.gmra.mxu0 %v247
    %v249 = vpop.f32.mrf.mxu0
    %v250 = vadd.f32 %v216, %v249
    %251 = vdwg.mxu0
    %252 = vmatpush.msra.mxu0 0.0
    %253 = vmatpush.msra.mxu0 0.0
    %254 = vmatpush.msra.mxu0 0.0
    %255 = vmatpush.msra.mxu0 0.0
    %256 = vmatpush.msra.mxu0 0.0
    %257 = vmatpush.msra.mxu0 0.0
    %258 = vmatpush.msra.mxu0 0.0
    %259 = vmatpush.msra.mxu0 0.0
    %260 = vmatpush.msra.mxu0 0.0
    %261 = vmatpush.msra.mxu0 0.0
    %262 = vmatpush.msra.mxu0 0.0
    %263 = vmatpush.msra.mxu0 0.0
    %264 = vmatpush.msra.mxu0 0.0
    %v265 = vand.u32 %v66, 4294901760
    %266 = vmatpush.msra.mxu0 %v265
    %v267 = vand.u32 %v64, 4294901760
    %268 = vmatpush.msra.mxu0 %v267
    %v269 = vand.u32 %v62, 4294901760
    %270 = vmatpush.msra.mxu0 %v269
    %v271 = vand.u32 %v72, 4294901760
    %272 = vmatmul.f32.gmra.mxu0 %v271
    %v273 = vpop.f32.mrf.mxu0
    %v274 = vadd.f32 %v246, %v273
    %v275 = vand.u32 %v75, 4294901760
    %276 = vmatmul.f32.gmra.mxu0 %v275
    %v277 = vpop.f32.mrf.mxu0
    %v278 = vadd.f32 %v250, %v277
    %279 = vdwg.mxu0
    %280 = vmatpush.msra.mxu0 0.0
    %281 = vmatpush.msra.mxu0 0.0
    %282 = vmatpush.msra.mxu0 0.0
    %283 = vmatpush.msra.mxu0 0.0
    %284 = vmatpush.msra.mxu0 0.0
    %285 = vmatpush.msra.mxu0 0.0
    %286 = vmatpush.msra.mxu0 0.0
    %287 = vmatpush.msra.mxu0 0.0
    %288 = vmatpush.msra.mxu0 0.0
    %289 = vmatpush.msra.mxu0 0.0
    %290 = vmatpush.msra.mxu0 0.0
    %291 = vmatpush.msra.mxu0 0.0
    %292 = vmatpush.msra.mxu0 0.0
    %v293 = vand.u32 %v67, 4294901760
    %294 = vmatpush.msra.mxu0 %v293
    %v295 = vand.u32 %v65, 4294901760
    %296 = vmatpush.msra.mxu0 %v295
    %v297 = vand.u32 %v63, 4294901760
    %298 = vmatpush.msra.mxu0 %v297
    %v299 = vand.u32 %v72, 4294901760
    %v300 = vsub.f32 %v72, %v299
    %v301 = vand.u32 %v300, 4294901760
    %v302 = vsub.f32 %v300, %v301
    %v303 = vand.u32 %v302, 4294901760
    %304 = vmatmul.f32.gmra.mxu0 %v303
    %v305 = vpop.f32.mrf.mxu0
    %v306 = vadd.f32 0.0, %v305
    %v307 = vand.u32 %v75, 4294901760
    %v308 = vsub.f32 %v75, %v307
    %v309 = vand.u32 %v308, 4294901760
    %v310 = vsub.f32 %v308, %v309
    %v311 = vand.u32 %v310, 4294901760
    %312 = vmatmul.f32.gmra.mxu0 %v311
    %v313 = vpop.f32.mrf.mxu0
    %v314 = vadd.f32 0.0, %v313
    %315 = vdwg.mxu0
    %316 = vmatpush.msra.mxu0 0.0
    %317 = vmatpush.msra.mxu0 0.0
    %318 = vmatpush.msra.mxu0 0.0
    %319 = vmatpush.msra.mxu0 0.0
    %320 = vmatpush.msra.mxu0 0.0
    %321 = vmatpush.msra.mxu0 0.0
    %322 = vmatpush.msra.mxu0 0.0
    %323 = vmatpush.msra.mxu0 0.0
    %324 = vmatpush.msra.mxu0 0.0
    %325 = vmatpush.msra.mxu0 0.0
    %326 = vmatpush.msra.mxu0 0.0
    %327 = vmatpush.msra.mxu0 0.0
    %328 = vmatpush.msra.mxu0 0.0
    %v329 = vand.u32 %v67, 4294901760
    %v330 = vsub.f32 %v67, %v329
    %v331 = vand.u32 %v330, 4294901760
    %v332 = vsub.f32 %v330, %v331
    %v333 = vand.u32 %v332, 4294901760
    %334 = vmatpush.msra.mxu0 %v333
    %v335 = vand.u32 %v65, 4294901760
    %v336 = vsub.f32 %v65, %v335
    %v337 = vand.u32 %v336, 4294901760
    %v338 = vsub.f32 %v336, %v337
    %v339 = vand.u32 %v338, 4294901760
    %340 = vmatpush.msra.mxu0 %v339
    %v341 = vand.u32 %v63, 4294901760
    %v342 = vsub.f32 %v63, %v341
    %v343 = vand.u32 %v342, 4294901760
    %v344 = vsub.f32 %v342, %v343
    %v345 = vand.u32 %v344, 4294901760
    %346 = vmatpush.msra.mxu0 %v345
    %v347 = vand.u32 %v72, 4294901760
    %348 = vmatmul.f32.gmra.mxu0 %v347
    %v349 = vpop.f32.mrf.mxu0
    %v350 = vadd.f32 %v306, %v349
    %v351 = vand.u32 %v75, 4294901760
    %352 = vmatmul.f32.gmra.mxu0 %v351
    %v353 = vpop.f32.mrf.mxu0
    %v354 = vadd.f32 %v314, %v353
    %355 = vdwg.mxu0
    %356 = vmatpush.msra.mxu0 0.0
    %357 = vmatpush.msra.mxu0 0.0
    %358 = vmatpush.msra.mxu0 0.0
    %359 = vmatpush.msra.mxu0 0.0
    %360 = vmatpush.msra.mxu0 0.0
    %361 = vmatpush.msra.mxu0 0.0
    %362 = vmatpush.msra.mxu0 0.0
    %363 = vmatpush.msra.mxu0 0.0
    %364 = vmatpush.msra.mxu0 0.0
    %365 = vmatpush.msra.mxu0 0.0
    %366 = vmatpush.msra.mxu0 0.0
    %367 = vmatpush.msra.mxu0 0.0
    %368 = vmatpush.msra.mxu0 0.0
    %v369 = vand.u32 %v67, 4294901760
    %v370 = vsub.f32 %v67, %v369
    %371 = vmatpush.msra.mxu0 %v370
    %v372 = vand.u32 %v65, 4294901760
    %v373 = vsub.f32 %v65, %v372
    %374 = vmatpush.msra.mxu0 %v373
    %v375 = vand.u32 %v63, 4294901760
    %v376 = vsub.f32 %v63, %v375
    %377 = vmatpush.msra.mxu0 %v376
    %v378 = vand.u32 %v72, 4294901760
    %v379 = vsub.f32 %v72, %v378
    %380 = vmatmul.f32.gmra.mxu0 %v379
    %v381 = vpop.f32.mrf.mxu0
    %v382 = vadd.f32 %v350, %v381
    %v383 = vand.u32 %v75, 4294901760
    %v384 = vsub.f32 %v75, %v383
    %385 = vmatmul.f32.gmra.mxu0 %v384
    %v386 = vpop.f32.mrf.mxu0
    %v387 = vadd.f32 %v354, %v386
    %388 = vdwg.mxu0
    %389 = vmatpush.msra.mxu0 0.0
    %390 = vmatpush.msra.mxu0 0.0
    %391 = vmatpush.msra.mxu0 0.0
    %392 = vmatpush.msra.mxu0 0.0
    %393 = vmatpush.msra.mxu0 0.0
    %394 = vmatpush.msra.mxu0 0.0
    %395 = vmatpush.msra.mxu0 0.0
    %396 = vmatpush.msra.mxu0 0.0
    %397 = vmatpush.msra.mxu0 0.0
    %398 = vmatpush.msra.mxu0 0.0
    %399 = vmatpush.msra.mxu0 0.0
    %400 = vmatpush.msra.mxu0 0.0
    %401 = vmatpush.msra.mxu0 0.0
    %v402 = vand.u32 %v67, 4294901760
    %403 = vmatpush.msra.mxu0 %v402
    %v404 = vand.u32 %v65, 4294901760
    %405 = vmatpush.msra.mxu0 %v404
    %v406 = vand.u32 %v63, 4294901760
    %407 = vmatpush.msra.mxu0 %v406
    %v408 = vand.u32 %v72, 4294901760
    %v409 = vsub.f32 %v72, %v408
    %v410 = vand.u32 %v409, 4294901760
    %411 = vmatmul.f32.gmra.mxu0 %v410
    %v412 = vpop.f32.mrf.mxu0
    %v413 = vadd.f32 %v382, %v412
    %v414 = vand.u32 %v75, 4294901760
    %v415 = vsub.f32 %v75, %v414
    %v416 = vand.u32 %v415, 4294901760
    %417 = vmatmul.f32.gmra.mxu0 %v416
    %v418 = vpop.f32.mrf.mxu0
    %v419 = vadd.f32 %v387, %v418
    %420 = vdwg.mxu0
    %421 = vmatpush.msra.mxu0 0.0
    %422 = vmatpush.msra.mxu0 0.0
    %423 = vmatpush.msra.mxu0 0.0
    %424 = vmatpush.msra.mxu0 0.0
    %425 = vmatpush.msra.mxu0 0.0
    %426 = vmatpush.msra.mxu0 0.0
    %427 = vmatpush.msra.mxu0 0.0
    %428 = vmatpush.msra.mxu0 0.0
    %429 = vmatpush.msra.mxu0 0.0
    %430 = vmatpush.msra.mxu0 0.0
    %431 = vmatpush.msra.mxu0 0.0
    %432 = vmatpush.msra.mxu0 0.0
    %433 = vmatpush.msra.mxu0 0.0
    %v434 = vand.u32 %v67, 4294901760
    %v435 = vsub.f32 %v67, %v434
    %v436 = vand.u32 %v435, 4294901760
    %437 = vmatpush.msra.mxu0 %v436
    %v438 = vand.u32 %v65, 4294901760
    %v439 = vsub.f32 %v65, %v438
    %v440 = vand.u32 %v439, 4294901760
    %441 = vmatpush.msra.mxu0 %v440
    %v442 = vand.u32 %v63, 4294901760
    %v443 = vsub.f32 %v63, %v442
    %v444 = vand.u32 %v443, 4294901760
    %445 = vmatpush.msra.mxu0 %v444
    %v446 = vand.u32 %v72, 4294901760
    %447 = vmatmul.f32.gmra.mxu0 %v446
    %v448 = vpop.f32.mrf.mxu0
    %v449 = vadd.f32 %v413, %v448
    %v450 = vand.u32 %v75, 4294901760
    %451 = vmatmul.f32.gmra.mxu0 %v450
    %v452 = vpop.f32.mrf.mxu0
    %v453 = vadd.f32 %v419, %v452
    %454 = vdwg.mxu0
    %455 = vmatpush.msra.mxu0 0.0
    %456 = vmatpush.msra.mxu0 0.0
    %457 = vmatpush.msra.mxu0 0.0
    %458 = vmatpush.msra.mxu0 0.0
    %459 = vmatpush.msra.mxu0 0.0
    %460 = vmatpush.msra.mxu0 0.0
    %461 = vmatpush.msra.mxu0 0.0
    %462 = vmatpush.msra.mxu0 0.0
    %463 = vmatpush.msra.mxu0 0.0
    %464 = vmatpush.msra.mxu0 0.0
    %465 = vmatpush.msra.mxu0 0.0
    %466 = vmatpush.msra.mxu0 0.0
    %467 = vmatpush.msra.mxu0 0.0
    %v468 = vand.u32 %v67, 4294901760
    %469 = vmatpush.msra.mxu0 %v468
    %v470 = vand.u32 %v65, 4294901760
    %471 = vmatpush.msra.mxu0 %v470
    %v472 = vand.u32 %v63, 4294901760
    %473 = vmatpush.msra.mxu0 %v472
    %v474 = vand.u32 %v72, 4294901760
    %475 = vmatmul.f32.gmra.mxu0 %v474
    %v476 = vpop.f32.mrf.mxu0
    %v477 = vadd.f32 %v449, %v476
    %v478 = vand.u32 %v75, 4294901760
    %479 = vmatmul.f32.gmra.mxu0 %v478
    %v480 = vpop.f32.mrf.mxu0
    %v481 = vadd.f32 %v453, %v480
    %482 = vdwg.mxu0
    %v483 = vld [vmem:[#allocation5] sm:$0xff]
    %v484 = vld [vmem:[#allocation5 + $0x8] sm:$0xff]
    %v485 = vld [vmem:[#allocation5 + $0x10] sm:$0xff]
    %v486 = vld [vmem:[#allocation5 + $0x18] sm:$0xff]
    %v487 = vld [vmem:[#allocation5 + $0x20] sm:$0xff]
    %v488 = vld [vmem:[#allocation5 + $0x28] sm:$0xff]
    %v489 = vld [vmem:[#allocation5 + $0x30] sm:$0xff]
    %v490 = vld [vmem:[#allocation5 + $0x38] sm:$0xff]
    %v491 = vld [vmem:[#allocation5 + $0x40] sm:$0xff]
    %v492 = vld [vmem:[#allocation5 + $0x48] sm:$0xff]
    %v493 = vld [vmem:[#allocation5 + $0x50] sm:$0xff]
    %v494 = vld [vmem:[#allocation5 + $0x58] sm:$0xff]
    %v495 = vld [vmem:[#allocation5 + $0x60] sm:$0xff]
    %v496 = vld [vmem:[#allocation5 + $0x68] sm:$0xff]
    %v497 = vld [vmem:[#allocation5 + $0x70] sm:$0xff]
    %v498 = vld [vmem:[#allocation5 + $0x78] sm:$0xff]
    %v499 = vld [vmem:[#allocation5 + $0x80] sm:$0xff]
    %v500 = vld [vmem:[#allocation5 + $0x88] sm:$0xff]
    %v501 = vld [vmem:[#allocation5 + $0x90] sm:$0xff]
    %v502 = vld [vmem:[#allocation5 + $0x98] sm:$0xff]
    %v503 = vld [vmem:[#allocation5 + $0xa0] sm:$0xff]
    %v504 = vld [vmem:[#allocation5 + $0xa8] sm:$0xff]
    %v505 = vld [vmem:[#allocation5 + $0xb0] sm:$0xff]
    %v506 = vld [vmem:[#allocation5 + $0xb8] sm:$0xff]
    %vm507 = vcmask 523264
    %v509 = vsel %vm507, %v477, 0
    %v512 = vsel %vm507, %v481, 0
    %v514 = vand.u32 %v498, 4294901760
    %515 = vmatpush.msra.mxu0 %v514
    %v516 = vand.u32 %v497, 4294901760
    %517 = vmatpush.msra.mxu0 %v516
    %v518 = vand.u32 %v496, 4294901760
    %519 = vmatpush.msra.mxu0 %v518
    %v520 = vand.u32 %v495, 4294901760
    %521 = vmatpush.msra.mxu0 %v520
    %v522 = vand.u32 %v494, 4294901760
    %523 = vmatpush.msra.mxu0 %v522
    %v524 = vand.u32 %v493, 4294901760
    %525 = vmatpush.msra.mxu0 %v524
    %v526 = vand.u32 %v492, 4294901760
    %527 = vmatpush.msra.mxu0 %v526
    %v528 = vand.u32 %v491, 4294901760
    %529 = vmatpush.msra.mxu0 %v528
    %v530 = vand.u32 %v490, 4294901760
    %531 = vmatpush.msra.mxu0 %v530
    %v532 = vand.u32 %v489, 4294901760
    %533 = vmatpush.msra.mxu0 %v532
    %v534 = vand.u32 %v488, 4294901760
    %535 = vmatpush.msra.mxu0 %v534
    %v536 = vand.u32 %v487, 4294901760
    %537 = vmatpush.msra.mxu0 %v536
    %v538 = vand.u32 %v486, 4294901760
    %539 = vmatpush.msra.mxu0 %v538
    %v540 = vand.u32 %v485, 4294901760
    %541 = vmatpush.msra.mxu0 %v540
    %v542 = vand.u32 %v484, 4294901760
    %543 = vmatpush.msra.mxu0 %v542
    %v544 = vand.u32 %v483, 4294901760
    %545 = vmatpush.msra.mxu0 %v544
    %v546 = vand.u32 %v274, 4294901760
    %v547 = vsub.f32 %v274, %v546
    %v548 = vand.u32 %v547, 4294901760
    %v549 = vsub.f32 %v547, %v548
    %v550 = vand.u32 %v549, 4294901760
    %551 = vmatmul.f32.gmra.mxu0 %v550
    %v552 = vpop.f32.mrf.mxu0
    %v553 = vadd.f32 0.0, %v552
    %v554 = vand.u32 %v278, 4294901760
    %v555 = vsub.f32 %v278, %v554
    %v556 = vand.u32 %v555, 4294901760
    %v557 = vsub.f32 %v555, %v556
    %v558 = vand.u32 %v557, 4294901760
    %559 = vmatmul.f32.gmra.mxu0 %v558
    %v560 = vpop.f32.mrf.mxu0
    %v561 = vadd.f32 0.0, %v560
    %562 = vdwg.mxu0
    %v563 = vand.u32 %v498, 4294901760
    %v564 = vsub.f32 %v498, %v563
    %v565 = vand.u32 %v564, 4294901760
    %v566 = vsub.f32 %v564, %v565
    %v567 = vand.u32 %v566, 4294901760
    %568 = vmatpush.msra.mxu0 %v567
    %v569 = vand.u32 %v497, 4294901760
    %v570 = vsub.f32 %v497, %v569
    %v571 = vand.u32 %v570, 4294901760
    %v572 = vsub.f32 %v570, %v571
    %v573 = vand.u32 %v572, 4294901760
    %574 = vmatpush.msra.mxu0 %v573
    %v575 = vand.u32 %v496, 4294901760
    %v576 = vsub.f32 %v496, %v575
    %v577 = vand.u32 %v576, 4294901760
    %v578 = vsub.f32 %v576, %v577
    %v579 = vand.u32 %v578, 4294901760
    %580 = vmatpush.msra.mxu0 %v579
    %v581 = vand.u32 %v495, 4294901760
    %v582 = vsub.f32 %v495, %v581
    %v583 = vand.u32 %v582, 4294901760
    %v584 = vsub.f32 %v582, %v583
    %v585 = vand.u32 %v584, 4294901760
    %586 = vmatpush.msra.mxu0 %v585
    %v587 = vand.u32 %v494, 4294901760
    %v588 = vsub.f32 %v494, %v587
    %v589 = vand.u32 %v588, 4294901760
    %v590 = vsub.f32 %v588, %v589
    %v591 = vand.u32 %v590, 4294901760
    %592 = vmatpush.msra.mxu0 %v591
    %v593 = vand.u32 %v493, 4294901760
    %v594 = vsub.f32 %v493, %v593
    %v595 = vand.u32 %v594, 4294901760
    %v596 = vsub.f32 %v594, %v595
    %v597 = vand.u32 %v596, 4294901760
    %598 = vmatpush.msra.mxu0 %v597
    %v599 = vand.u32 %v492, 4294901760
    %v600 = vsub.f32 %v492, %v599
    %v601 = vand.u32 %v600, 4294901760
    %v602 = vsub.f32 %v600, %v601
    %v603 = vand.u32 %v602, 4294901760
    %604 = vmatpush.msra.mxu0 %v603
    %v605 = vand.u32 %v491, 4294901760
    %v606 = vsub.f32 %v491, %v605
    %v607 = vand.u32 %v606, 4294901760
    %v608 = vsub.f32 %v606, %v607
    %v609 = vand.u32 %v608, 4294901760
    %610 = vmatpush.msra.mxu0 %v609
    %v611 = vand.u32 %v490, 4294901760
    %v612 = vsub.f32 %v490, %v611
    %v613 = vand.u32 %v612, 4294901760
    %v614 = vsub.f32 %v612, %v613
    %v615 = vand.u32 %v614, 4294901760
    %616 = vmatpush.msra.mxu0 %v615
    %v617 = vand.u32 %v489, 4294901760
    %v618 = vsub.f32 %v489, %v617
    %v619 = vand.u32 %v618, 4294901760
    %v620 = vsub.f32 %v618, %v619
    %v621 = vand.u32 %v620, 4294901760
    %622 = vmatpush.msra.mxu0 %v621
    %v623 = vand.u32 %v488, 4294901760
    %v624 = vsub.f32 %v488, %v623
    %v625 = vand.u32 %v624, 4294901760
    %v626 = vsub.f32 %v624, %v625
    %v627 = vand.u32 %v626, 4294901760
    %628 = vmatpush.msra.mxu0 %v627
    %v629 = vand.u32 %v487, 4294901760
    %v630 = vsub.f32 %v487, %v629
    %v631 = vand.u32 %v630, 4294901760
    %v632 = vsub.f32 %v630, %v631
    %v633 = vand.u32 %v632, 4294901760
    %634 = vmatpush.msra.mxu0 %v633
    %v635 = vand.u32 %v486, 4294901760
    %v636 = vsub.f32 %v486, %v635
    %v637 = vand.u32 %v636, 4294901760
    %v638 = vsub.f32 %v636, %v637
    %v639 = vand.u32 %v638, 4294901760
    %640 = vmatpush.msra.mxu0 %v639
    %v641 = vand.u32 %v485, 4294901760
    %v642 = vsub.f32 %v485, %v641
    %v643 = vand.u32 %v642, 4294901760
    %v644 = vsub.f32 %v642, %v643
    %v645 = vand.u32 %v644, 4294901760
    %646 = vmatpush.msra.mxu0 %v645
    %v647 = vand.u32 %v484, 4294901760
    %v648 = vsub.f32 %v484, %v647
    %v649 = vand.u32 %v648, 4294901760
    %v650 = vsub.f32 %v648, %v649
    %v651 = vand.u32 %v650, 4294901760
    %652 = vmatpush.msra.mxu0 %v651
    %v653 = vand.u32 %v483, 4294901760
    %v654 = vsub.f32 %v483, %v653
    %v655 = vand.u32 %v654, 4294901760
    %v656 = vsub.f32 %v654, %v655
    %v657 = vand.u32 %v656, 4294901760
    %658 = vmatpush.msra.mxu0 %v657
    %v659 = vand.u32 %v274, 4294901760
    %660 = vmatmul.f32.gmra.mxu0 %v659
    %v661 = vpop.f32.mrf.mxu0
    %v662 = vadd.f32 %v553, %v661
    %v663 = vand.u32 %v278, 4294901760
    %664 = vmatmul.f32.gmra.mxu0 %v663
    %v665 = vpop.f32.mrf.mxu0
    %v666 = vadd.f32 %v561, %v665
    %667 = vdwg.mxu0
    %v668 = vand.u32 %v498, 4294901760
    %v669 = vsub.f32 %v498, %v668
    %670 = vmatpush.msra.mxu0 %v669
    %v671 = vand.u32 %v497, 4294901760
    %v672 = vsub.f32 %v497, %v671
    %673 = vmatpush.msra.mxu0 %v672
    %v674 = vand.u32 %v496, 4294901760
    %v675 = vsub.f32 %v496, %v674
    %676 = vmatpush.msra.mxu0 %v675
    %v677 = vand.u32 %v495, 4294901760
    %v678 = vsub.f32 %v495, %v677
    %679 = vmatpush.msra.mxu0 %v678
    %v680 = vand.u32 %v494, 4294901760
    %v681 = vsub.f32 %v494, %v680
    %682 = vmatpush.msra.mxu0 %v681
    %v683 = vand.u32 %v493, 4294901760
    %v684 = vsub.f32 %v493, %v683
    %685 = vmatpush.msra.mxu0 %v684
    %v686 = vand.u32 %v492, 4294901760
    %v687 = vsub.f32 %v492, %v686
    %688 = vmatpush.msra.mxu0 %v687
    %v689 = vand.u32 %v491, 4294901760
    %v690 = vsub.f32 %v491, %v689
    %691 = vmatpush.msra.mxu0 %v690
    %v692 = vand.u32 %v490, 4294901760
    %v693 = vsub.f32 %v490, %v692
    %694 = vmatpush.msra.mxu0 %v693
    %v695 = vand.u32 %v489, 4294901760
    %v696 = vsub.f32 %v489, %v695
    %697 = vmatpush.msra.mxu0 %v696
    %v698 = vand.u32 %v488, 4294901760
    %v699 = vsub.f32 %v488, %v698
    %700 = vmatpush.msra.mxu0 %v699
    %v701 = vand.u32 %v487, 4294901760
    %v702 = vsub.f32 %v487, %v701
    %703 = vmatpush.msra.mxu0 %v702
    %v704 = vand.u32 %v486, 4294901760
    %v705 = vsub.f32 %v486, %v704
    %706 = vmatpush.msra.mxu0 %v705
    %v707 = vand.u32 %v485, 4294901760
    %v708 = vsub.f32 %v485, %v707
    %709 = vmatpush.msra.mxu0 %v708
    %v710 = vand.u32 %v484, 4294901760
    %v711 = vsub.f32 %v484, %v710
    %712 = vmatpush.msra.mxu0 %v711
    %v713 = vand.u32 %v483, 4294901760
    %v714 = vsub.f32 %v483, %v713
    %715 = vmatpush.msra.mxu0 %v714
    %v716 = vand.u32 %v274, 4294901760
    %v717 = vsub.f32 %v274, %v716
    %718 = vmatmul.f32.gmra.mxu0 %v717
    %v719 = vpop.f32.mrf.mxu0
    %v720 = vadd.f32 %v662, %v719
    %v721 = vand.u32 %v278, 4294901760
    %v722 = vsub.f32 %v278, %v721
    %723 = vmatmul.f32.gmra.mxu0 %v722
    %v724 = vpop.f32.mrf.mxu0
    %v725 = vadd.f32 %v666, %v724
    %726 = vdwg.mxu0
    %v727 = vand.u32 %v498, 4294901760
    %728 = vmatpush.msra.mxu0 %v727
    %v729 = vand.u32 %v497, 4294901760
    %730 = vmatpush.msra.mxu0 %v729
    %v731 = vand.u32 %v496, 4294901760
    %732 = vmatpush.msra.mxu0 %v731
    %v733 = vand.u32 %v495, 4294901760
    %734 = vmatpush.msra.mxu0 %v733
    %v735 = vand.u32 %v494, 4294901760
    %736 = vmatpush.msra.mxu0 %v735
    %v737 = vand.u32 %v493, 4294901760
    %738 = vmatpush.msra.mxu0 %v737
    %v739 = vand.u32 %v492, 4294901760
    %740 = vmatpush.msra.mxu0 %v739
    %v741 = vand.u32 %v491, 4294901760
    %742 = vmatpush.msra.mxu0 %v741
    %v743 = vand.u32 %v490, 4294901760
    %744 = vmatpush.msra.mxu0 %v743
    %v745 = vand.u32 %v489, 4294901760
    %746 = vmatpush.msra.mxu0 %v745
    %v747 = vand.u32 %v488, 4294901760
    %748 = vmatpush.msra.mxu0 %v747
    %v749 = vand.u32 %v487, 4294901760
    %750 = vmatpush.msra.mxu0 %v749
    %v751 = vand.u32 %v486, 4294901760
    %752 = vmatpush.msra.mxu0 %v751
    %v753 = vand.u32 %v485, 4294901760
    %754 = vmatpush.msra.mxu0 %v753
    %v755 = vand.u32 %v484, 4294901760
    %756 = vmatpush.msra.mxu0 %v755
    %v757 = vand.u32 %v483, 4294901760
    %758 = vmatpush.msra.mxu0 %v757
    %v759 = vand.u32 %v274, 4294901760
    %v760 = vsub.f32 %v274, %v759
    %v761 = vand.u32 %v760, 4294901760
    %762 = vmatmul.f32.gmra.mxu0 %v761
    %v763 = vpop.f32.mrf.mxu0
    %v764 = vadd.f32 %v720, %v763
    %v765 = vand.u32 %v278, 4294901760
    %v766 = vsub.f32 %v278, %v765
    %v767 = vand.u32 %v766, 4294901760
    %768 = vmatmul.f32.gmra.mxu0 %v767
    %v769 = vpop.f32.mrf.mxu0
    %v770 = vadd.f32 %v725, %v769
    %771 = vdwg.mxu0
    %v772 = vand.u32 %v498, 4294901760
    %v773 = vsub.f32 %v498, %v772
    %v774 = vand.u32 %v773, 4294901760
    %775 = vmatpush.msra.mxu0 %v774
    %v776 = vand.u32 %v497, 4294901760
    %v777 = vsub.f32 %v497, %v776
    %v778 = vand.u32 %v777, 4294901760
    %779 = vmatpush.msra.mxu0 %v778
    %v780 = vand.u32 %v496, 4294901760
    %v781 = vsub.f32 %v496, %v780
    %v782 = vand.u32 %v781, 4294901760
    %783 = vmatpush.msra.mxu0 %v782
    %v784 = vand.u32 %v495, 4294901760
    %v785 = vsub.f32 %v495, %v784
    %v786 = vand.u32 %v785, 4294901760
    %787 = vmatpush.msra.mxu0 %v786
    %v788 = vand.u32 %v494, 4294901760
    %v789 = vsub.f32 %v494, %v788
    %v790 = vand.u32 %v789, 4294901760
    %791 = vmatpush.msra.mxu0 %v790
    %v792 = vand.u32 %v493, 4294901760
    %v793 = vsub.f32 %v493, %v792
    %v794 = vand.u32 %v793, 4294901760
    %795 = vmatpush.msra.mxu0 %v794
    %v796 = vand.u32 %v492, 4294901760
    %v797 = vsub.f32 %v492, %v796
    %v798 = vand.u32 %v797, 4294901760
    %799 = vmatpush.msra.mxu0 %v798
    %v800 = vand.u32 %v491, 4294901760
    %v801 = vsub.f32 %v491, %v800
    %v802 = vand.u32 %v801, 4294901760
    %803 = vmatpush.msra.mxu0 %v802
    %v804 = vand.u32 %v490, 4294901760
    %v805 = vsub.f32 %v490, %v804
    %v806 = vand.u32 %v805, 4294901760
    %807 = vmatpush.msra.mxu0 %v806
    %v808 = vand.u32 %v489, 4294901760
    %v809 = vsub.f32 %v489, %v808
    %v810 = vand.u32 %v809, 4294901760
    %811 = vmatpush.msra.mxu0 %v810
    %v812 = vand.u32 %v488, 4294901760
    %v813 = vsub.f32 %v488, %v812
    %v814 = vand.u32 %v813, 4294901760
    %815 = vmatpush.msra.mxu0 %v814
    %v816 = vand.u32 %v487, 4294901760
    %v817 = vsub.f32 %v487, %v816
    %v818 = vand.u32 %v817, 4294901760
    %819 = vmatpush.msra.mxu0 %v818
    %v820 = vand.u32 %v486, 4294901760
    %v821 = vsub.f32 %v486, %v820
    %v822 = vand.u32 %v821, 4294901760
    %823 = vmatpush.msra.mxu0 %v822
    %v824 = vand.u32 %v485, 4294901760
    %v825 = vsub.f32 %v485, %v824
    %v826 = vand.u32 %v825, 4294901760
    %827 = vmatpush.msra.mxu0 %v826
    %v828 = vand.u32 %v484, 4294901760
    %v829 = vsub.f32 %v484, %v828
    %v830 = vand.u32 %v829, 4294901760
    %831 = vmatpush.msra.mxu0 %v830
    %v832 = vand.u32 %v483, 4294901760
    %v833 = vsub.f32 %v483, %v832
    %v834 = vand.u32 %v833, 4294901760
    %835 = vmatpush.msra.mxu0 %v834
    %v836 = vand.u32 %v274, 4294901760
    %837 = vmatmul.f32.gmra.mxu0 %v836
    %v838 = vpop.f32.mrf.mxu0
    %v839 = vadd.f32 %v764, %v838
    %v840 = vand.u32 %v278, 4294901760
    %841 = vmatmul.f32.gmra.mxu0 %v840
    %v842 = vpop.f32.mrf.mxu0
    %v843 = vadd.f32 %v770, %v842
    %844 = vdwg.mxu0
    %v845 = vand.u32 %v498, 4294901760
    %846 = vmatpush.msra.mxu0 %v845
    %v847 = vand.u32 %v497, 4294901760
    %848 = vmatpush.msra.mxu0 %v847
    %v849 = vand.u32 %v496, 4294901760
    %850 = vmatpush.msra.mxu0 %v849
    %v851 = vand.u32 %v495, 4294901760
    %852 = vmatpush.msra.mxu0 %v851
    %v853 = vand.u32 %v494, 4294901760
    %854 = vmatpush.msra.mxu0 %v853
    %v855 = vand.u32 %v493, 4294901760
    %856 = vmatpush.msra.mxu0 %v855
    %v857 = vand.u32 %v492, 4294901760
    %858 = vmatpush.msra.mxu0 %v857
    %v859 = vand.u32 %v491, 4294901760
    %860 = vmatpush.msra.mxu0 %v859
    %v861 = vand.u32 %v490, 4294901760
    %862 = vmatpush.msra.mxu0 %v861
    %v863 = vand.u32 %v489, 4294901760
    %864 = vmatpush.msra.mxu0 %v863
    %v865 = vand.u32 %v488, 4294901760
    %866 = vmatpush.msra.mxu0 %v865
    %v867 = vand.u32 %v487, 4294901760
    %868 = vmatpush.msra.mxu0 %v867
    %v869 = vand.u32 %v486, 4294901760
    %870 = vmatpush.msra.mxu0 %v869
    %v871 = vand.u32 %v485, 4294901760
    %872 = vmatpush.msra.mxu0 %v871
    %v873 = vand.u32 %v484, 4294901760
    %874 = vmatpush.msra.mxu0 %v873
    %v875 = vand.u32 %v483, 4294901760
    %876 = vmatpush.msra.mxu0 %v875
    %v877 = vand.u32 %v274, 4294901760
    %878 = vmatmul.f32.gmra.mxu0 %v877
    %v879 = vpop.f32.mrf.mxu0
    %v880 = vadd.f32 %v839, %v879
    %v881 = vand.u32 %v278, 4294901760
    %882 = vmatmul.f32.gmra.mxu0 %v881
    %v883 = vpop.f32.mrf.mxu0
    %v884 = vadd.f32 %v843, %v883
    %885 = vdwg.mxu0
    %886 = vmatpush.msra.mxu0 0.0
    %887 = vmatpush.msra.mxu0 0.0
    %888 = vmatpush.msra.mxu0 0.0
    %889 = vmatpush.msra.mxu0 0.0
    %890 = vmatpush.msra.mxu0 0.0
    %891 = vmatpush.msra.mxu0 0.0
    %892 = vmatpush.msra.mxu0 0.0
    %893 = vmatpush.msra.mxu0 0.0
    %v894 = vand.u32 %v506, 4294901760
    %895 = vmatpush.msra.mxu0 %v894
    %v896 = vand.u32 %v505, 4294901760
    %897 = vmatpush.msra.mxu0 %v896
    %v898 = vand.u32 %v504, 4294901760
    %899 = vmatpush.msra.mxu0 %v898
    %v900 = vand.u32 %v503, 4294901760
    %901 = vmatpush.msra.mxu0 %v900
    %v902 = vand.u32 %v502, 4294901760
    %903 = vmatpush.msra.mxu0 %v902
    %v904 = vand.u32 %v501, 4294901760
    %905 = vmatpush.msra.mxu0 %v904
    %v906 = vand.u32 %v500, 4294901760
    %907 = vmatpush.msra.mxu0 %v906
    %v908 = vand.u32 %v499, 4294901760
    %909 = vmatpush.msra.mxu0 %v908
    %v910 = vand.u32 %v509, 4294901760
    %v911 = vsub.f32 %v509, %v910
    %v912 = vand.u32 %v911, 4294901760
    %v913 = vsub.f32 %v911, %v912
    %v914 = vand.u32 %v913, 4294901760
    %915 = vmatmul.f32.gmra.mxu0 %v914
    %v916 = vpop.f32.mrf.mxu0
    %v917 = vadd.f32 %v880, %v916
    %v918 = vand.u32 %v512, 4294901760
    %v919 = vsub.f32 %v512, %v918
    %v920 = vand.u32 %v919, 4294901760
    %v921 = vsub.f32 %v919, %v920
    %v922 = vand.u32 %v921, 4294901760
    %923 = vmatmul.f32.gmra.mxu0 %v922
    %v924 = vpop.f32.mrf.mxu0
    %v925 = vadd.f32 %v884, %v924
    %926 = vdwg.mxu0
    %927 = vmatpush.msra.mxu0 0.0
    %928 = vmatpush.msra.mxu0 0.0
    %929 = vmatpush.msra.mxu0 0.0
    %930 = vmatpush.msra.mxu0 0.0
    %931 = vmatpush.msra.mxu0 0.0
    %932 = vmatpush.msra.mxu0 0.0
    %933 = vmatpush.msra.mxu0 0.0
    %934 = vmatpush.msra.mxu0 0.0
    %v935 = vand.u32 %v506, 4294901760
    %v936 = vsub.f32 %v506, %v935
    %v937 = vand.u32 %v936, 4294901760
    %v938 = vsub.f32 %v936, %v937
    %v939 = vand.u32 %v938, 4294901760
    %940 = vmatpush.msra.mxu0 %v939
    %v941 = vand.u32 %v505, 4294901760
    %v942 = vsub.f32 %v505, %v941
    %v943 = vand.u32 %v942, 4294901760
    %v944 = vsub.f32 %v942, %v943
    %v945 = vand.u32 %v944, 4294901760
    %946 = vmatpush.msra.mxu0 %v945
    %v947 = vand.u32 %v504, 4294901760
    %v948 = vsub.f32 %v504, %v947
    %v949 = vand.u32 %v948, 4294901760
    %v950 = vsub.f32 %v948, %v949
    %v951 = vand.u32 %v950, 4294901760
    %952 = vmatpush.msra.mxu0 %v951
    %v953 = vand.u32 %v503, 4294901760
    %v954 = vsub.f32 %v503, %v953
    %v955 = vand.u32 %v954, 4294901760
    %v956 = vsub.f32 %v954, %v955
    %v957 = vand.u32 %v956, 4294901760
    %958 = vmatpush.msra.mxu0 %v957
    %v959 = vand.u32 %v502, 4294901760
    %v960 = vsub.f32 %v502, %v959
    %v961 = vand.u32 %v960, 4294901760
    %v962 = vsub.f32 %v960, %v961
    %v963 = vand.u32 %v962, 4294901760
    %964 = vmatpush.msra.mxu0 %v963
    %v965 = vand.u32 %v501, 4294901760
    %v966 = vsub.f32 %v501, %v965
    %v967 = vand.u32 %v966, 4294901760
    %v968 = vsub.f32 %v966, %v967
    %v969 = vand.u32 %v968, 4294901760
    %970 = vmatpush.msra.mxu0 %v969
    %v971 = vand.u32 %v500, 4294901760
    %v972 = vsub.f32 %v500, %v971
    %v973 = vand.u32 %v972, 4294901760
    %v974 = vsub.f32 %v972, %v973
    %v975 = vand.u32 %v974, 4294901760
    %976 = vmatpush.msra.mxu0 %v975
    %v977 = vand.u32 %v499, 4294901760
    %v978 = vsub.f32 %v499, %v977
    %v979 = vand.u32 %v978, 4294901760
    %v980 = vsub.f32 %v978, %v979
    %v981 = vand.u32 %v980, 4294901760
    %982 = vmatpush.msra.mxu0 %v981
    %v983 = vand.u32 %v509, 4294901760
    %984 = vmatmul.f32.gmra.mxu0 %v983
    %v985 = vpop.f32.mrf.mxu0
    %v986 = vadd.f32 %v917, %v985
    %v987 = vand.u32 %v512, 4294901760
    %988 = vmatmul.f32.gmra.mxu0 %v987
    %v989 = vpop.f32.mrf.mxu0
    %v990 = vadd.f32 %v925, %v989
    %991 = vdwg.mxu0
    %992 = vmatpush.msra.mxu0 0.0
    %993 = vmatpush.msra.mxu0 0.0
    %994 = vmatpush.msra.mxu0 0.0
    %995 = vmatpush.msra.mxu0 0.0
    %996 = vmatpush.msra.mxu0 0.0
    %997 = vmatpush.msra.mxu0 0.0
    %998 = vmatpush.msra.mxu0 0.0
    %999 = vmatpush.msra.mxu0 0.0
    %v1000 = vand.u32 %v506, 4294901760
    %v1001 = vsub.f32 %v506, %v1000
    %1002 = vmatpush.msra.mxu0 %v1001
    %v1003 = vand.u32 %v505, 4294901760
    %v1004 = vsub.f32 %v505, %v1003
    %1005 = vmatpush.msra.mxu0 %v1004
    %v1006 = vand.u32 %v504, 4294901760
    %v1007 = vsub.f32 %v504, %v1006
    %1008 = vmatpush.msra.mxu0 %v1007
    %v1009 = vand.u32 %v503, 4294901760
    %v1010 = vsub.f32 %v503, %v1009
    %1011 = vmatpush.msra.mxu0 %v1010
    %v1012 = vand.u32 %v502, 4294901760
    %v1013 = vsub.f32 %v502, %v1012
    %1014 = vmatpush.msra.mxu0 %v1013
    %v1015 = vand.u32 %v501, 4294901760
    %v1016 = vsub.f32 %v501, %v1015
    %1017 = vmatpush.msra.mxu0 %v1016
    %v1018 = vand.u32 %v500, 4294901760
    %v1019 = vsub.f32 %v500, %v1018
    %1020 = vmatpush.msra.mxu0 %v1019
    %v1021 = vand.u32 %v499, 4294901760
    %v1022 = vsub.f32 %v499, %v1021
    %1023 = vmatpush.msra.mxu0 %v1022
    %v1024 = vand.u32 %v509, 4294901760
    %v1025 = vsub.f32 %v509, %v1024
    %1026 = vmatmul.f32.gmra.mxu0 %v1025
    %v1027 = vpop.f32.mrf.mxu0
    %v1028 = vadd.f32 %v986, %v1027
    %v1029 = vand.u32 %v512, 4294901760
    %v1030 = vsub.f32 %v512, %v1029
    %1031 = vmatmul.f32.gmra.mxu0 %v1030
    %v1032 = vpop.f32.mrf.mxu0
    %v1033 = vadd.f32 %v990, %v1032
    %1034 = vdwg.mxu0
    %1035 = vmatpush.msra.mxu0 0.0
    %1036 = vmatpush.msra.mxu0 0.0
    %1037 = vmatpush.msra.mxu0 0.0
    %1038 = vmatpush.msra.mxu0 0.0
    %1039 = vmatpush.msra.mxu0 0.0
    %1040 = vmatpush.msra.mxu0 0.0
    %1041 = vmatpush.msra.mxu0 0.0
    %1042 = vmatpush.msra.mxu0 0.0
    %v1043 = vand.u32 %v506, 4294901760
    %1044 = vmatpush.msra.mxu0 %v1043
    %v1045 = vand.u32 %v505, 4294901760
    %1046 = vmatpush.msra.mxu0 %v1045
    %v1047 = vand.u32 %v504, 4294901760
    %1048 = vmatpush.msra.mxu0 %v1047
    %v1049 = vand.u32 %v503, 4294901760
    %1050 = vmatpush.msra.mxu0 %v1049
    %v1051 = vand.u32 %v502, 4294901760
    %1052 = vmatpush.msra.mxu0 %v1051
    %v1053 = vand.u32 %v501, 4294901760
    %1054 = vmatpush.msra.mxu0 %v1053
    %v1055 = vand.u32 %v500, 4294901760
    %1056 = vmatpush.msra.mxu0 %v1055
    %v1057 = vand.u32 %v499, 4294901760
    %1058 = vmatpush.msra.mxu0 %v1057
    %v1059 = vand.u32 %v509, 4294901760
    %v1060 = vsub.f32 %v509, %v1059
    %v1061 = vand.u32 %v1060, 4294901760
    %1062 = vmatmul.f32.gmra.mxu0 %v1061
    %v1063 = vpop.f32.mrf.mxu0
    %v1064 = vadd.f32 %v1028, %v1063
    %v1065 = vand.u32 %v512, 4294901760
    %v1066 = vsub.f32 %v512, %v1065
    %v1067 = vand.u32 %v1066, 4294901760
    %1068 = vmatmul.f32.gmra.mxu0 %v1067
    %v1069 = vpop.f32.mrf.mxu0
    %v1070 = vadd.f32 %v1033, %v1069
    %1071 = vdwg.mxu0
    %1072 = vmatpush.msra.mxu0 0.0
    %1073 = vmatpush.msra.mxu0 0.0
    %1074 = vmatpush.msra.mxu0 0.0
    %1075 = vmatpush.msra.mxu0 0.0
    %1076 = vmatpush.msra.mxu0 0.0
    %1077 = vmatpush.msra.mxu0 0.0
    %1078 = vmatpush.msra.mxu0 0.0
    %1079 = vmatpush.msra.mxu0 0.0
    %v1080 = vand.u32 %v506, 4294901760
    %v1081 = vsub.f32 %v506, %v1080
    %v1082 = vand.u32 %v1081, 4294901760
    %1083 = vmatpush.msra.mxu0 %v1082
    %v1084 = vand.u32 %v505, 4294901760
    %v1085 = vsub.f32 %v505, %v1084
    %v1086 = vand.u32 %v1085, 4294901760
    %1087 = vmatpush.msra.mxu0 %v1086
    %v1088 = vand.u32 %v504, 4294901760
    %v1089 = vsub.f32 %v504, %v1088
    %v1090 = vand.u32 %v1089, 4294901760
    %1091 = vmatpush.msra.mxu0 %v1090
    %v1092 = vand.u32 %v503, 4294901760
    %v1093 = vsub.f32 %v503, %v1092
    %v1094 = vand.u32 %v1093, 4294901760
    %1095 = vmatpush.msra.mxu0 %v1094
    %v1096 = vand.u32 %v502, 4294901760
    %v1097 = vsub.f32 %v502, %v1096
    %v1098 = vand.u32 %v1097, 4294901760
    %1099 = vmatpush.msra.mxu0 %v1098
    %v1100 = vand.u32 %v501, 4294901760
    %v1101 = vsub.f32 %v501, %v1100
    %v1102 = vand.u32 %v1101, 4294901760
    %1103 = vmatpush.msra.mxu0 %v1102
    %v1104 = vand.u32 %v500, 4294901760
    %v1105 = vsub.f32 %v500, %v1104
    %v1106 = vand.u32 %v1105, 4294901760
    %1107 = vmatpush.msra.mxu0 %v1106
    %v1108 = vand.u32 %v499, 4294901760
    %v1109 = vsub.f32 %v499, %v1108
    %v1110 = vand.u32 %v1109, 4294901760
    %1111 = vmatpush.msra.mxu0 %v1110
    %v1112 = vand.u32 %v509, 4294901760
    %1113 = vmatmul.f32.gmra.mxu0 %v1112
    %v1114 = vpop.f32.mrf.mxu0
    %v1115 = vadd.f32 %v1064, %v1114
    %v1116 = vand.u32 %v512, 4294901760
    %1117 = vmatmul.f32.gmra.mxu0 %v1116
    %v1118 = vpop.f32.mrf.mxu0
    %v1119 = vadd.f32 %v1070, %v1118
    %1120 = vdwg.mxu0
    %1121 = vmatpush.msra.mxu0 0.0
    %1122 = vmatpush.msra.mxu0 0.0
    %1123 = vmatpush.msra.mxu0 0.0
    %1124 = vmatpush.msra.mxu0 0.0
    %1125 = vmatpush.msra.mxu0 0.0
    %1126 = vmatpush.msra.mxu0 0.0
    %1127 = vmatpush.msra.mxu0 0.0
    %1128 = vmatpush.msra.mxu0 0.0
    %v1129 = vand.u32 %v506, 4294901760
    %1130 = vmatpush.msra.mxu0 %v1129
    %v1131 = vand.u32 %v505, 4294901760
    %1132 = vmatpush.msra.mxu0 %v1131
    %v1133 = vand.u32 %v504, 4294901760
    %1134 = vmatpush.msra.mxu0 %v1133
    %v1135 = vand.u32 %v503, 4294901760
    %1136 = vmatpush.msra.mxu0 %v1135
    %v1137 = vand.u32 %v502, 4294901760
    %1138 = vmatpush.msra.mxu0 %v1137
    %v1139 = vand.u32 %v501, 4294901760
    %1140 = vmatpush.msra.mxu0 %v1139
    %v1141 = vand.u32 %v500, 4294901760
    %1142 = vmatpush.msra.mxu0 %v1141
    %v1143 = vand.u32 %v499, 4294901760
    %1144 = vmatpush.msra.mxu0 %v1143
    %v1145 = vand.u32 %v509, 4294901760
    %1146 = vmatmul.f32.gmra.mxu0 %v1145
    %v1147 = vpop.f32.mrf.mxu0
    %v1148 = vadd.f32 %v1115, %v1147
    %v1149 = vand.u32 %v512, 4294901760
    %1150 = vmatmul.f32.gmra.mxu0 %v1149
    %v1151 = vpop.f32.mrf.mxu0
    %v1152 = vadd.f32 %v1119, %v1151
    %1153 = vdwg.mxu0
    %1154 = vst [vmem:[#allocation8] sm:$0xff] %v1148
    %1155 = vst [vmem:[#allocation8 + $0x8] sm:$0xff] %v1152
    // Predicated region
    $region26: #{tpu_custom_call.1} parent=1 // pred_check
      _
    $region27: #{tpu_custom_call.1} parent=1 // pred_check_branch
      %1157 = sbr.rel (0) target = $region29
    $region28: #{tpu_custom_call.1} parent=1 // pred_region
      %1159 = vsyncadd [#allocation4], 0
      %s1160 = sshll.u32 [#allocation8], 4
      %s1161 = int_to_ptr.vmem [resolvable:$true] %s1160
      %s1162 = sshll.u32 %s3, 4
      %s1163 = int_to_ptr.hbm [resolvable:$true] %s1162
      %1168 = dma.vmem_to_hbm [thread:$0]  %s1161, 256, %s1163, [#allocation4], 128, 128, 8
    $region29: #{tpu_custom_call.1} parent=1 // pred_fallthru
      _
    // Predicated region
    $region30: #{tpu_custom_call.1} parent=1 // pred_check
      _
    $region31: #{tpu_custom_call.1} parent=1 // pred_check_branch
      %1170 = sbr.rel (0) target = $region33
    $region32: #{tpu_custom_call.1} parent=1 // pred_region
      %1172 = dma.done [#allocation4], 256
    $region33: #{tpu_custom_call.1} parent=1 // pred_fallthru
      _
    %1173 = vsyncpa [#allocation3], 1
    %1174 = vsyncpa [#allocation6], 1
    %1175 = vsyncpa [#allocation4], 1

</llo_original>
